<compile_context>
chip_gen: v5e
topology: v5e:2x2
jax: 0.10.0
libtpu: 0.0.40
codegen_flags: <defaults>
</compile_context>

<pallas_src>
import jax
import jax.numpy as jnp
from jax.experimental import pallas as pl
from jax.experimental.pallas import tpu as pltpu


def _abmil_kernel(x_ref, mask_ref, wvu_ref, bvu_ref, ww_ref, wb_ref, out_ref):
    # x_ref:    (Bt, S, D)      mask_ref: (Bt, S, 1)
    # wvu:      (D, 2*Hp)       bvu:      (1, 2*Hp)   [V | U], lane-padded
    # ww:       (Hp, NH)        wb:       (1, NH)     (zero rows for padding)
    # out_ref:  (Bt, NH, D)     pooled bag representations (D lane-dense)
    Bt, S, D = x_ref.shape
    Hp, NH = ww_ref.shape

    x = x_ref[...]                                   # (Bt, S, D)
    x2d = x.reshape(Bt * S, D)                       # collapse leading dims (D stays on lanes)

    # Gated projections as ONE big (Bt*S, D) @ (D, 2*Hp) MXU matmul.
    hall = jnp.dot(x2d, wvu_ref[...], preferred_element_type=jnp.float32) \
        + bvu_ref[...]                               # (Bt*S, 2*Hp)
    v = jnp.tanh(hall[:, :Hp])                       # lane-tile aligned split
    u = jax.nn.sigmoid(hall[:, Hp:])
    h = v * u                                        # (Bt*S, Hp)

    scores = jnp.dot(h, ww_ref[...], preferred_element_type=jnp.float32) \
        + wb_ref[...]                                # (Bt*S, NH)
    scores = scores.reshape(Bt, S, NH)               # split leading dim only

    pad = mask_ref[...] > 0.5                        # (Bt, S, 1)  True = padding
    scores = jnp.where(pad, jnp.float32(-1e9), scores)

    # Numerically-stable softmax over the instance axis S (per bag, per head).
    m = jnp.max(scores, axis=1, keepdims=True)       # (Bt, 1, NH)
    e = jnp.exp(scores - m)                          # (Bt, S, NH)  (EUP)
    denom = jnp.sum(e, axis=1, keepdims=True)        # (Bt, 1, NH)

    if NH == 1:
        # VPU weighted-sum pooling; 1/denom folded into the small output
        # instead of normalizing the full attention map. No transpose,
        # no tiny (1, S) @ (S, D) matmul.
        pooled = jnp.sum(e * x, axis=1, keepdims=True)           # (Bt, 1, D)
        out = pooled / denom                                     # (Bt, 1, D)
    else:
        # Small static head count: per-head VPU weighted sums (still no
        # attn.T / batched matmul, MXU stays free for the projections).
        heads = []
        for n in range(NH):
            en = e[:, :, n:n + 1]                                # (Bt, S, 1)
            dn = denom[:, :, n:n + 1]                            # (Bt, 1, 1)
            heads.append(jnp.sum(en * x, axis=1, keepdims=True) / dn)
        out = jnp.concatenate(heads, axis=1)                     # (Bt, NH, D)

    out_ref[...] = out.astype(out_ref.dtype)


def _pick_bags_per_block(B, S, D):
    """Bags per grid step: fill the MXU M dim (>=256 rows) but keep the x
    block <= ~4 MiB per pipeline buffer (fits v7x's smaller VMEM with
    double-buffering)."""
    bytes_per_bag = S * D * 4
    vmem_cap = max(1, (4 * 1024 * 1024) // max(bytes_per_bag, 1))
    want = max(1, -(-256 // S))                      # ceil(256 / S)
    return max(1, min(B, want, vmem_cap))


def gated_abmil_forward(x, mask, params):
    """x: (B,S,D) f32; mask: (B,S) f32/bool (1/True = padding).
    Returns (logits, out_flat) matching the PyTorch module."""
    B, S, D = x.shape
    vw, vb, uw, ub, ww, wb, cw, cb = params
    H = vw.shape[1]
    NH = ww.shape[1]
    C = cw.shape[1]

    # Pad the hidden dim to a lane-tile multiple and fuse V|U into one weight
    # so the in-kernel split is on a 128-lane boundary.  Zero-padded columns
    # give tanh(0)*sigmoid(0) gated values that hit zero-padded Ww rows, so
    # the attention scores are unchanged.
    Hp = -(-H // 128) * 128
    wvu = jnp.concatenate([jnp.pad(vw, ((0, 0), (0, Hp - H))),
                           jnp.pad(uw, ((0, 0), (0, Hp - H)))], axis=1)   # (D, 2*Hp)
    bvu = jnp.concatenate([jnp.pad(vb, (0, Hp - H)),
                           jnp.pad(ub, (0, Hp - H))]).reshape(1, 2 * Hp)  # (1, 2*Hp)
    ww_p = jnp.pad(ww, ((0, Hp - H), (0, 0)))                             # (Hp, NH)
    wb2 = wb.reshape(1, NH)

    Bt = _pick_bags_per_block(B, S, D)
    Bp = -(-B // Bt) * Bt                            # pad batch to multiple of Bt
    xp = x
    maskp = mask.astype(jnp.float32)
    if Bp != B:
        xp = jnp.pad(xp, ((0, Bp - B), (0, 0), (0, 0)))
        maskp = jnp.pad(maskp, ((0, Bp - B), (0, 0)))
    mask3 = maskp.reshape(Bp, S, 1)

    fixed = lambda b: (0, 0)
    pooled = pl.pallas_call(
        _abmil_kernel,
        out_shape=jax.ShapeDtypeStruct((Bp, NH, D), jnp.float32),
        grid_spec=pltpu.PrefetchScalarGridSpec(
            num_scalar_prefetch=0,
            grid=(Bp // Bt,),
            in_specs=[
                pl.BlockSpec((Bt, S, D), lambda b: (b, 0, 0)),    # x
                pl.BlockSpec((Bt, S, 1), lambda b: (b, 0, 0)),    # mask
                pl.BlockSpec((D, 2 * Hp), fixed),                 # [V|U] weights
                pl.BlockSpec((1, 2 * Hp), fixed),                 # [V|U] biases
                pl.BlockSpec((Hp, NH), fixed),                    # Ww (padded)
                pl.BlockSpec((1, NH), fixed),                     # Wb
            ],
            out_specs=pl.BlockSpec((Bt, NH, D), lambda b: (b, 0, 0)),
        ),
        compiler_params=pltpu.CompilerParams(
            dimension_semantics=("parallel",),        # bags independent -> both v7x TCs
            vmem_limit_bytes=32 * 1024 * 1024),
    )(xp, mask3, wvu, bvu, ww_p, wb2)

    # Classifier + flatten done in the wrapper as one batched XLA matmul
    # (an in-kernel version would be an M=1, N=1 dot: zero MXU utilization).
    out_flat = pooled[:B].reshape(B, NH * D)
    logits = out_flat @ cw + cb.reshape(1, C)
    return logits, out_flat


def _init_linear(key, fan_in, fan_out):
    # Mimic PyTorch nn.Linear default init: U(-1/sqrt(fan_in), 1/sqrt(fan_in))
    kw, kb = jax.random.split(key)
    bound = 1.0 / jnp.sqrt(jnp.float32(fan_in))
    w = jax.random.uniform(kw, (fan_in, fan_out), jnp.float32, -bound, bound)
    b = jax.random.uniform(kb, (fan_out,), jnp.float32, -bound, bound)
    return w, b


def _reference_forward(x, mask, params):
    vw, vb, uw, ub, ww, wb, cw, cb = params
    v = jnp.tanh(x @ vw + vb)
    u = jax.nn.sigmoid(x @ uw + ub)
    h = v * u
    scores = h @ ww + wb                                 # (B,S,NH)
    scores = jnp.where(mask[..., None] > 0.5, -1e9, scores)
    attn = jax.nn.softmax(scores, axis=1)
    attn_t = jnp.swapaxes(attn, 1, 2)                    # (B,NH,S)
    out = jnp.einsum('bns,bsd->bnd', attn_t, x)
    out_flat = out.reshape(x.shape[0], -1)
    logits = out_flat @ cw + cb
    return logits, out_flat


if __name__ == "__main__":
    B, S, D, H, NH = 2, 8, 16, 32, 1
    num_classes = 2
    C = num_classes - 1   # binary -> single logit (matches the PyTorch module)

    key = jax.random.PRNGKey(0)
    kx, kv, ku, kw, kc = jax.random.split(key, 5)

    x = jax.random.normal(kx, (B, S, D), jnp.float32)
    # mask: 1.0 marks padding positions (last two instances of bag 1 padded)
    mask = jnp.zeros((B, S), jnp.float32).at[1, S - 2:].set(1.0)

    vw, vb = _init_linear(kv, D, H)
    uw, ub = _init_linear(ku, D, H)
    ww, wb = _init_linear(kw, H, NH)
    cw, cb = _init_linear(kc, NH * D, C)
    params = (vw, vb, uw, ub, ww, wb, cw, cb)

    logits, out_flat = gated_abmil_forward(x, mask, params)
    logits, out_flat = jax.block_until_ready((logits, out_flat))

    ref_logits, ref_out = _reference_forward(x, mask, params)
    assert jnp.allclose(logits, ref_logits, atol=1e-4, rtol=1e-4)
    assert jnp.allclose(out_flat, ref_out, atol=1e-4, rtol=1e-4)

    # TODO(synk): training loop / early stopping / wandb logging / checkpoint
    # I/O from the PyTorch wrapper class are host-side control flow, not
    # kernel work, and are intentionally not reproduced here.
    print("KERNEL_OK")
</pallas_src>

<mosaic_0001>
module attributes {stable_mosaic.version = 11 : i64} {
  func.func @_abmil_kernel(%arg0: i32, %arg1: memref<2x8x16xf32, #tpu.memory_space<vmem>>, %arg2: memref<2x8x1xf32, #tpu.memory_space<vmem>>, %arg3: memref<16x256xf32, #tpu.memory_space<vmem>>, %arg4: memref<1x256xf32, #tpu.memory_space<vmem>>, %arg5: memref<128x1xf32, #tpu.memory_space<vmem>>, %arg6: memref<1x1xf32, #tpu.memory_space<vmem>>, %arg7: memref<2x1x16xf32, #tpu.memory_space<vmem>>) attributes {dimension_semantics = [#tpu.dimension_semantics<parallel>], iteration_bounds = array<i64: 1>, scalar_prefetch = 0 : i64, scratch_operands = 0 : i64, tpu.core_type = #tpu.core_type<tc>, window_params = [{transform_indices = @transform_0, window_bounds = array<i64: 2, 8, 16>}, {transform_indices = @transform_1, window_bounds = array<i64: 2, 8, 1>}, {pipeline_mode = #tpu.pipeline_mode<synchronous>, transform_indices = @transform_2, window_bounds = array<i64: 16, 256>}, {pipeline_mode = #tpu.pipeline_mode<synchronous>, transform_indices = @transform_3, window_bounds = array<i64: 1, 256>}, {pipeline_mode = #tpu.pipeline_mode<synchronous>, transform_indices = @transform_4, window_bounds = array<i64: 128, 1>}, {pipeline_mode = #tpu.pipeline_mode<synchronous>, transform_indices = @transform_5, window_bounds = array<i64: 1, 1>}, {transform_indices = @transform_6, window_bounds = array<i64: 2, 1, 16>}]} {
    %c0 = arith.constant 0 : index
    %c0_0 = arith.constant 0 : index
    %c0_1 = arith.constant 0 : index
    %0 = vector.load %arg1[%c0, %c0_0, %c0_1] : memref<2x8x16xf32, #tpu.memory_space<vmem>>, vector<2x8x16xf32>
    %1 = vector.shape_cast %0 : vector<2x8x16xf32> to vector<16x16xf32>
    %c0_2 = arith.constant 0 : index
    %c0_3 = arith.constant 0 : index
    %2 = vector.load %arg3[%c0_2, %c0_3] : memref<16x256xf32, #tpu.memory_space<vmem>>, vector<16x256xf32>
    %cst = arith.constant dense<0.000000e+00> : vector<16x256xf32>
    %3 = tpu.matmul %1, %2, %cst {dimension_numbers = #tpu.dot_dimension_numbers<[1], [0], [0], [1], [0, 0, 1, 1], [], []>} : vector<16x16xf32>, vector<16x256xf32>, vector<16x256xf32> -> vector<16x256xf32>
    %c0_4 = arith.constant 0 : index
    %c0_5 = arith.constant 0 : index
    %4 = vector.load %arg4[%c0_4, %c0_5] : memref<1x256xf32, #tpu.memory_space<vmem>>, vector<1x256xf32>
    %5 = vector.broadcast %4 : vector<1x256xf32> to vector<16x256xf32>
    %6 = arith.addf %3, %5 : vector<16x256xf32>
    %7 = vector.extract_strided_slice %6 {offsets = [0, 0], sizes = [16, 128], strides = [1, 1]} : vector<16x256xf32> to vector<16x128xf32>
    %8 = math.tanh %7 : vector<16x128xf32>
    %9 = vector.extract_strided_slice %6 {offsets = [0, 128], sizes = [16, 128], strides = [1, 1]} : vector<16x256xf32> to vector<16x128xf32>
    %10 = arith.negf %9 : vector<16x128xf32>
    %11 = math.exp %10 : vector<16x128xf32>
    %cst_6 = arith.constant 1.000000e+00 : f32
    %12 = vector.broadcast %cst_6 : f32 to vector<16x128xf32>
    %13 = arith.addf %12, %11 : vector<16x128xf32>
    %14 = arith.divf %12, %13 : vector<16x128xf32>
    %15 = arith.mulf %8, %14 : vector<16x128xf32>
    %c0_7 = arith.constant 0 : index
    %c0_8 = arith.constant 0 : index
    %16 = vector.load %arg5[%c0_7, %c0_8] : memref<128x1xf32, #tpu.memory_space<vmem>>, vector<128x1xf32>
    %cst_9 = arith.constant dense<0.000000e+00> : vector<16x1xf32>
    %17 = tpu.matmul %15, %16, %cst_9 {dimension_numbers = #tpu.dot_dimension_numbers<[1], [0], [0], [1], [0, 0, 1, 1], [], []>} : vector<16x128xf32>, vector<128x1xf32>, vector<16x1xf32> -> vector<16x1xf32>
    %c0_10 = arith.constant 0 : index
    %c0_11 = arith.constant 0 : index
    %18 = vector.load %arg6[%c0_10, %c0_11] : memref<1x1xf32, #tpu.memory_space<vmem>>, vector<1x1xf32>
    %19 = vector.broadcast %18 : vector<1x1xf32> to vector<16x1xf32>
    %20 = arith.addf %17, %19 : vector<16x1xf32>
    %21 = vector.shape_cast %20 : vector<16x1xf32> to vector<2x8x1xf32>
    %c0_12 = arith.constant 0 : index
    %c0_13 = arith.constant 0 : index
    %c0_14 = arith.constant 0 : index
    %22 = vector.load %arg2[%c0_12, %c0_13, %c0_14] : memref<2x8x1xf32, #tpu.memory_space<vmem>>, vector<2x8x1xf32>
    %cst_15 = arith.constant 5.000000e-01 : f32
    %23 = vector.broadcast %cst_15 : f32 to vector<2x8x1xf32>
    %24 = arith.cmpf ogt, %22, %23 : vector<2x8x1xf32>
    %cst_16 = arith.constant -1.000000e+09 : f32
    %25 = vector.broadcast %cst_16 : f32 to vector<2x8x1xf32>
    %26 = arith.select %24, %25, %21 : vector<2x8x1xi1>, vector<2x8x1xf32>
    %cst_17 = arith.constant dense<0xFF800000> : vector<2x1xf32>
    %27 = vector.multi_reduction <maximumf>, %26, %cst_17 [1] : vector<2x8x1xf32> to vector<2x1xf32>
    %28 = vector.shape_cast %27 : vector<2x1xf32> to vector<2x1x1xf32>
    %29 = vector.broadcast %28 : vector<2x1x1xf32> to vector<2x8x1xf32>
    %30 = arith.subf %26, %29 : vector<2x8x1xf32>
    %31 = math.exp %30 : vector<2x8x1xf32>
    %cst_18 = arith.constant dense<0.000000e+00> : vector<2x1xf32>
    %32 = vector.multi_reduction <add>, %31, %cst_18 [1] : vector<2x8x1xf32> to vector<2x1xf32>
    %33 = vector.shape_cast %32 : vector<2x1xf32> to vector<2x1x1xf32>
    %34 = vector.broadcast %31 : vector<2x8x1xf32> to vector<2x8x16xf32>
    %35 = arith.mulf %34, %0 : vector<2x8x16xf32>
    %cst_19 = arith.constant dense<0.000000e+00> : vector<2x16xf32>
    %36 = vector.multi_reduction <add>, %35, %cst_19 [1] : vector<2x8x16xf32> to vector<2x16xf32>
    %37 = vector.shape_cast %36 : vector<2x16xf32> to vector<2x1x16xf32>
    %38 = vector.broadcast %33 : vector<2x1x1xf32> to vector<2x1x16xf32>
    %39 = arith.divf %37, %38 : vector<2x1x16xf32>
    %c0_20 = arith.constant 0 : index
    %c0_21 = arith.constant 0 : index
    %c0_22 = arith.constant 0 : index
    %40 = vector.load %arg7[%c0_20, %c0_21, %c0_22] : memref<2x1x16xf32, #tpu.memory_space<vmem>>, vector<2x1x16xf32>
    tpu.vector_store %arg7[%c0_20, %c0_21, %c0_22], %39 {strides = array<i32>} : memref<2x1x16xf32, #tpu.memory_space<vmem>>, vector<2x1x16xf32>,
    return
  }
  func.func @transform_0(%arg0: i32) -> (i32, i32, i32) {
    %c0_i32 = arith.constant 0 : i32
    %c0_i32_0 = arith.constant 0 : i32
    %c0_i32_1 = arith.constant 0 : i32
    return %arg0, %c0_i32, %c0_i32_0 : i32, i32, i32
  }
  func.func @transform_1(%arg0: i32) -> (i32, i32, i32) {
    %c0_i32 = arith.constant 0 : i32
    %c0_i32_0 = arith.constant 0 : i32
    %c0_i32_1 = arith.constant 0 : i32
    return %arg0, %c0_i32, %c0_i32_0 : i32, i32, i32
  }
  func.func @transform_2(%arg0: i32) -> (i32, i32) {
    %c0_i32 = arith.constant 0 : i32
    %c0_i32_0 = arith.constant 0 : i32
    %c0_i32_1 = arith.constant 0 : i32
    return %c0_i32, %c0_i32_0 : i32, i32
  }
  func.func @transform_3(%arg0: i32) -> (i32, i32) {
    %c0_i32 = arith.constant 0 : i32
    %c0_i32_0 = arith.constant 0 : i32
    %c0_i32_1 = arith.constant 0 : i32
    return %c0_i32, %c0_i32_0 : i32, i32
  }
  func.func @transform_4(%arg0: i32) -> (i32, i32) {
    %c0_i32 = arith.constant 0 : i32
    %c0_i32_0 = arith.constant 0 : i32
    %c0_i32_1 = arith.constant 0 : i32
    return %c0_i32, %c0_i32_0 : i32, i32
  }
  func.func @transform_5(%arg0: i32) -> (i32, i32) {
    %c0_i32 = arith.constant 0 : i32
    %c0_i32_0 = arith.constant 0 : i32
    %c0_i32_1 = arith.constant 0 : i32
    return %c0_i32, %c0_i32_0 : i32, i32
  }
  func.func @transform_6(%arg0: i32) -> (i32, i32, i32) {
    %c0_i32 = arith.constant 0 : i32
    %c0_i32_0 = arith.constant 0 : i32
    %c0_i32_1 = arith.constant 0 : i32
    return %arg0, %c0_i32, %c0_i32_0 : i32, i32, i32
  }
}

</mosaic_0001>

<llo_original>
// kernel: tpu_custom_call.1
$region0: #{tpu_custom_call.1}
  #allocation0 [shape = 'u32[]', space=smem, size = 0x4, offset = 0x4, fixed_abs, tag = 'smem constant byte address 0x4 - core index']
  #allocation1 [shape = 'u32[72,128]{1,0:T(1,128)}', space=vmem, size = 0x9000, scoped, tag = 'internal scratch']
  #allocation2 [shape = 'f32[1,1]{1,0:T(1,128)S(1)}', space=vmem, size = 0x200, scoped, tag = 'scoped memory for tpu_custom_call.1']
  %s0 = inlined_call_operand.vmem [shape: f32[2,8,16], index: 0, kind: input, shape index: {}]
  %s1 = inlined_call_operand.vmem [shape: f32[2,8,1], index: 1, kind: input, shape index: {}]
  %s2 = inlined_call_operand.vmem [shape: f32[16,256], index: 2, kind: input, shape index: {}]
  %s3 = inlined_call_operand.vmem [shape: f32[1,256], index: 3, kind: input, shape index: {}]
  %s4 = inlined_call_operand.vmem [shape: f32[128,1], index: 4, kind: input, shape index: {}]
  %s5 = inlined_call_operand.<no memory space> [shape: f32[1,1], index: 5, kind: input, shape index: {}]
  %s6 = inlined_call_operand.hbm [shape: f32[2,1,16], index: 6, kind: output, shape index: {}]
  %s7 = sld [smem:[#allocation0]]
  $region34: #{tpu_custom_call.1} parent=0
    _
  %s9 = ssub.s32 1, %s7
  %s10 = scalar_select 0, %s9, %s7
  %v11 = vstv %s5
  %12 = vst [vmem:[#allocation2] sm:$0x1] %v11
  $region1: #{tpu_custom_call.1} parent=0
    #allocation3 [shape = 'u8[1024]{0}', space=vmem, size = 0x400, scoped, tag = 'output window, operand 0, single buffered']
    #allocation4 [shape = 's32[1]{0}', space=sflag, size = 0x4, scoped, tag = 'scoped memory for tpu_custom_call.1']
    %13 = vsyncpa [#allocation4], 0
    // Predicated region
    $region2: #{tpu_custom_call.1} parent=1 // pred_check
      _
    $region3: #{tpu_custom_call.1} parent=1 // pred_check_branch
      %15 = sbr.rel (0) target = $region5
    $region4: #{tpu_custom_call.1} parent=1 // pred_region
      _
    $region5: #{tpu_custom_call.1} parent=1 // pred_fallthru
      _
    // Predicated region
    $region6: #{tpu_custom_call.1} parent=1 // pred_check
      _
    $region7: #{tpu_custom_call.1} parent=1 // pred_check_branch
      %17 = sbr.rel (0) target = $region9
    $region8: #{tpu_custom_call.1} parent=1 // pred_region
      _
    $region9: #{tpu_custom_call.1} parent=1 // pred_fallthru
      _
    // Predicated region
    $region10: #{tpu_custom_call.1} parent=1 // pred_check
      _
    $region11: #{tpu_custom_call.1} parent=1 // pred_check_branch
      %19 = sbr.rel (0) target = $region13
    $region12: #{tpu_custom_call.1} parent=1 // pred_region
      _
    $region13: #{tpu_custom_call.1} parent=1 // pred_fallthru
      _
    // Predicated region
    $region14: #{tpu_custom_call.1} parent=1 // pred_check
      _
    $region15: #{tpu_custom_call.1} parent=1 // pred_check_branch
      %21 = sbr.rel (0) target = $region17
    $region16: #{tpu_custom_call.1} parent=1 // pred_region
      _
    $region17: #{tpu_custom_call.1} parent=1 // pred_fallthru
      _
    // Predicated region
    $region18: #{tpu_custom_call.1} parent=1 // pred_check
      _
    $region19: #{tpu_custom_call.1} parent=1 // pred_check_branch
      %23 = sbr.rel (0) target = $region21
    $region20: #{tpu_custom_call.1} parent=1 // pred_region
      _
    $region21: #{tpu_custom_call.1} parent=1 // pred_fallthru
      _
    // Predicated region
    $region22: #{tpu_custom_call.1} parent=1 // pred_check
      _
    $region23: #{tpu_custom_call.1} parent=1 // pred_check_branch
      %25 = sbr.rel (0) target = $region25
    $region24: #{tpu_custom_call.1} parent=1 // pred_region
      _
    $region25: #{tpu_custom_call.1} parent=1 // pred_fallthru
      _
    %v26 = vld [vmem:[%s0] sm:$0xff]
    %v27 = vld [vmem:[%s0 + $0x8] sm:$0xff]
    %v28 = vld [vmem:[%s2] sm:$0xff]
    %v29 = vld [vmem:[%s2 + $0x8] sm:$0xff]
    %v30 = vld [vmem:[%s2 + $0x10] sm:$0xff]
    %v31 = vld [vmem:[%s2 + $0x18] sm:$0xff]
    %v32 = vld [vmem:[%s3] sm:$0x3]
    %v34 = vperm.slane %v32, 0
    %v35 = vperm.slane %v32, 1
    %vm38 = vcmask 130048
    %v40 = vsel %vm38, %v26, 0
    %v43 = vsel %vm38, %v27, 0
    %45 = vmatpush.msra.mxu0 0.0
    %46 = vmatpush.msra.mxu0 0.0
    %47 = vmatpush.msra.mxu0 0.0
    %48 = vmatpush.msra.mxu0 0.0
    %49 = vmatpush.msra.mxu0 0.0
    %50 = vmatpush.msra.mxu0 0.0
    %51 = vmatpush.msra.mxu0 0.0
    %52 = vmatpush.msra.mxu0 0.0
    %53 = vmatpush.msra.mxu0 0.0
    %54 = vmatpush.msra.mxu0 0.0
    %55 = vmatpush.msra.mxu0 0.0
    %56 = vmatpush.msra.mxu0 0.0
    %57 = vmatpush.msra.mxu0 0.0
    %58 = vmatpush.msra.mxu0 0.0
    %59 = vmatpush.msra.mxu0 %v30
    %60 = vmatpush.msra.mxu0 %v28
    %61 = vmatmul.f32.gmra.mxu0 %v40
    %v62 = vpop.f32.mrf.mxu0
    %v63 = vadd.f32 %v34, %v62
    %64 = vmatmul.f32.gmra.mxu0 %v43
    %v65 = vpop.f32.mrf.mxu0
    %v66 = vadd.f32 %v34, %v65
    %67 = vdwg.mxu0
    %68 = vmatpush.msra.mxu0 0.0
    %69 = vmatpush.msra.mxu0 0.0
    %70 = vmatpush.msra.mxu0 0.0
    %71 = vmatpush.msra.mxu0 0.0
    %72 = vmatpush.msra.mxu0 0.0
    %73 = vmatpush.msra.mxu0 0.0
    %74 = vmatpush.msra.mxu0 0.0
    %75 = vmatpush.msra.mxu0 0.0
    %76 = vmatpush.msra.mxu0 0.0
    %77 = vmatpush.msra.mxu0 0.0
    %78 = vmatpush.msra.mxu0 0.0
    %79 = vmatpush.msra.mxu0 0.0
    %80 = vmatpush.msra.mxu0 0.0
    %81 = vmatpush.msra.mxu0 0.0
    %82 = vmatpush.msra.mxu0 %v31
    %83 = vmatpush.msra.mxu0 %v29
    %84 = vmatmul.f32.gmra.mxu0 %v40
    %v85 = vpop.f32.mrf.mxu0
    %v86 = vadd.f32 %v35, %v85
    %87 = vmatmul.f32.gmra.mxu0 %v43
    %v88 = vpop.f32.mrf.mxu0
    %v89 = vadd.f32 %v35, %v88
    %90 = vdwg.mxu0
    %v91 = vtanh.pop %v63
    %v92 = vtanh.pop %v66
    %v93 = vxor.u32 %v86, 2147483648
    %v94 = vxor.u32 %v89, 2147483648
    %v95 = vmul.f32 %v93, 1.442695
    %v96 = vpow.pop %v95
    %v97 = vmul.f32 %v94, 1.442695
    %v98 = vpow.pop %v97
    %v99 = vadd.f32 %v96, 1.0
    %v100 = vadd.f32 %v98, 1.0
    %v101 = vrcp.pop %v99
    %v102 = vmul.f32 %v99, %v101
    %v103 = vsub.f32 1.0, %v102
    %v104 = vmul.f32 %v101, %v103
    %v105 = vadd.f32 %v101, %v104
    %vm106 = vweird.f32 %v99
    %vm107 = vweird.f32 %v101
    %vm108 = vmor %vm106, %vm107
    %v109 = vsel %vm108, %v101, %v105
    %v110 = vand.u32 2147483647, %v99
    %vm111 = vcmp.eq.f32.partialorder %v110, 8.507059e+37
    %v112 = vand.u32 %v99, 2147483648
    %v113 = vor.u32 1.1754944e-38, %v112
    %v114 = vsel %vm111, %v113, %v109
    %v115 = vmul.f32 1.0, %v114
    %v116 = vrcp.pop %v100
    %v117 = vmul.f32 %v100, %v116
    %v118 = vsub.f32 1.0, %v117
    %v119 = vmul.f32 %v116, %v118
    %v120 = vadd.f32 %v116, %v119
    %vm121 = vweird.f32 %v100
    %vm122 = vweird.f32 %v116
    %vm123 = vmor %vm121, %vm122
    %v124 = vsel %vm123, %v116, %v120
    %v125 = vand.u32 2147483647, %v100
    %vm126 = vcmp.eq.f32.partialorder %v125, 8.507059e+37
    %v127 = vand.u32 %v100, 2147483648
    %v128 = vor.u32 1.1754944e-38, %v127
    %v129 = vsel %vm126, %v128, %v124
    %v130 = vmul.f32 1.0, %v129
    %v131 = vmul.f32 %v91, %v115
    %v132 = vmul.f32 %v92, %v130
    %v133 = vld [vmem:[%s4] sm:$0xff]
    %v134 = vld [vmem:[%s4 + $0x8] sm:$0xff]
    %v135 = vld [vmem:[%s4 + $0x10] sm:$0xff]
    %v136 = vld [vmem:[%s4 + $0x18] sm:$0xff]
    %v137 = vld [vmem:[%s4 + $0x20] sm:$0xff]
    %v138 = vld [vmem:[%s4 + $0x28] sm:$0xff]
    %v139 = vld [vmem:[%s4 + $0x30] sm:$0xff]
    %v140 = vld [vmem:[%s4 + $0x38] sm:$0xff]
    %v141 = vld [vmem:[%s4 + $0x40] sm:$0xff]
    %v142 = vld [vmem:[%s4 + $0x48] sm:$0xff]
    %v143 = vld [vmem:[%s4 + $0x50] sm:$0xff]
    %v144 = vld [vmem:[%s4 + $0x58] sm:$0xff]
    %v145 = vld [vmem:[%s4 + $0x60] sm:$0xff]
    %v146 = vld [vmem:[%s4 + $0x68] sm:$0xff]
    %v147 = vld [vmem:[%s4 + $0x70] sm:$0xff]
    %v148 = vld [vmem:[%s4 + $0x78] sm:$0xff]
    %v149 = vld [vmem:[#allocation2] sm:$0x1]
    %v151 = vperm.slane %v149, 0
    %153 = vmatpush.msra.mxu0 %v148
    %154 = vmatpush.msra.mxu0 %v147
    %155 = vmatpush.msra.mxu0 %v146
    %156 = vmatpush.msra.mxu0 %v145
    %157 = vmatpush.msra.mxu0 %v144
    %158 = vmatpush.msra.mxu0 %v143
    %159 = vmatpush.msra.mxu0 %v142
    %160 = vmatpush.msra.mxu0 %v141
    %161 = vmatpush.msra.mxu0 %v140
    %162 = vmatpush.msra.mxu0 %v139
    %163 = vmatpush.msra.mxu0 %v138
    %164 = vmatpush.msra.mxu0 %v137
    %165 = vmatpush.msra.mxu0 %v136
    %166 = vmatpush.msra.mxu0 %v135
    %167 = vmatpush.msra.mxu0 %v134
    %168 = vmatpush.msra.mxu0 %v133
    %169 = vmatmul.f32.gmra.mxu0 %v131
    %v170 = vpop.f32.mrf.mxu0
    %v171 = vadd.f32 %v151, %v170
    %172 = vmatmul.f32.gmra.mxu0 %v132
    %v173 = vpop.f32.mrf.mxu0
    %v174 = vadd.f32 %v151, %v173
    %175 = vdwg.mxu0
    %v176 = vld [vmem:[%s1] sm:$0xff]
    %v177 = vld [vmem:[%s1 + $0x8] sm:$0xff]
    %vm178 = vcmp.gt.f32.partialorder %v176, 0.5
    %vm179 = vcmp.gt.f32.partialorder %v177, 0.5
    %v180 = vsel %vm178, -1e+09, %v171
    %v181 = vsel %vm179, -1e+09, %v174
    %vm182 = vcmask 7168
    %v183 = vsel %vm182, %v180, -inf
    %v184 = vrot.slane %v183, 4
    %v185 = vmax.f32 %v183, %v184
    %v186 = vrot.slane %v185, 2
    %v187 = vmax.f32 %v185, %v186
    %v188 = vrot.slane %v187, 1
    %v189 = vmax.f32 %v187, %v188
    %v190 = vsel %vm182, %v181, -inf
    %v191 = vrot.slane %v190, 4
    %v192 = vmax.f32 %v190, %v191
    %v193 = vrot.slane %v192, 2
    %v194 = vmax.f32 %v192, %v193
    %v195 = vrot.slane %v194, 1
    %v196 = vmax.f32 %v194, %v195
    %v197 = vsub.f32 %v180, %v189
    %v198 = vsub.f32 %v181, %v196
    %v199 = vmul.f32 %v197, 1.442695
    %v200 = vpow.pop %v199
    %v201 = vmul.f32 %v198, 1.442695
    %v202 = vpow.pop %v201
    %v203 = vsel %vm182, %v200, 0.0
    %v204 = vrot.slane %v203, 4
    %v205 = vadd.f32 %v203, %v204
    %v206 = vrot.slane %v205, 2
    %v207 = vadd.f32 %v205, %v206
    %v208 = vrot.slane %v207, 1
    %v209 = vadd.f32 %v207, %v208
    %v210 = vsel %vm182, %v202, 0.0
    %v211 = vrot.slane %v210, 4
    %v212 = vadd.f32 %v210, %v211
    %v213 = vrot.slane %v212, 2
    %v214 = vadd.f32 %v212, %v213
    %v215 = vrot.slane %v214, 1
    %v216 = vadd.f32 %v214, %v215
    %218 = vset.pattern.permute.xlu0 0
    %219 = vperm.xlu0 %218, %v200
    %v220 = vpop.permute.xlu0 %219
    %223 = vset.pattern.permute.xlu0 0
    %224 = vperm.xlu0 %223, %v202
    %v225 = vpop.permute.xlu0 %224
    %v227 = vmul.f32 %v220, %v26
    %v228 = vmul.f32 %v225, %v27
    %v229 = vsel %vm38, %v227, 0.0
    %v230 = vrot.slane %v229, 4
    %v231 = vadd.f32 %v229, %v230
    %v232 = vrot.slane %v231, 2
    %v233 = vadd.f32 %v231, %v232
    %v234 = vrot.slane %v233, 1
    %v235 = vadd.f32 %v233, %v234
    %v236 = vsel %vm38, %v228, 0.0
    %v237 = vrot.slane %v236, 4
    %v238 = vadd.f32 %v236, %v237
    %v239 = vrot.slane %v238, 2
    %v240 = vadd.f32 %v238, %v239
    %v241 = vrot.slane %v240, 1
    %v242 = vadd.f32 %v240, %v241
    %244 = vset.pattern.permute.xlu0 0
    %245 = vperm.xlu0 %244, %v209
    %v246 = vpop.permute.xlu0 %245
    %249 = vset.pattern.permute.xlu0 0
    %250 = vperm.xlu0 %249, %v216
    %v251 = vpop.permute.xlu0 %250
    %v253 = vrcp.pop %v246
    %v254 = vmul.f32 %v246, %v253
    %v255 = vsub.f32 1.0, %v254
    %v256 = vmul.f32 %v253, %v255
    %v257 = vadd.f32 %v253, %v256
    %vm258 = vweird.f32 %v246
    %vm259 = vweird.f32 %v253
    %vm260 = vmor %vm258, %vm259
    %v261 = vsel %vm260, %v253, %v257
    %v262 = vand.u32 2147483647, %v246
    %vm263 = vcmp.eq.f32.partialorder %v262, 8.507059e+37
    %v264 = vand.u32 %v246, 2147483648
    %v265 = vor.u32 1.1754944e-38, %v264
    %v266 = vsel %vm263, %v265, %v261
    %v267 = vmul.f32 %v235, %v266
    %v268 = vrcp.pop %v251
    %v269 = vmul.f32 %v251, %v268
    %v270 = vsub.f32 1.0, %v269
    %v271 = vmul.f32 %v268, %v270
    %v272 = vadd.f32 %v268, %v271
    %vm273 = vweird.f32 %v251
    %vm274 = vweird.f32 %v268
    %vm275 = vmor %vm273, %vm274
    %v276 = vsel %vm275, %v268, %v272
    %v277 = vand.u32 2147483647, %v251
    %vm278 = vcmp.eq.f32.partialorder %v277, 8.507059e+37
    %v279 = vand.u32 %v251, 2147483648
    %v280 = vor.u32 1.1754944e-38, %v279
    %v281 = vsel %vm278, %v280, %v276
    %v282 = vmul.f32 %v242, %v281
    %vm283 = vcmask 122880
    %284 = vst.msk [vmem:[#allocation3] sm:$0x1] %vm283, %v267
    %285 = vst.msk [vmem:[#allocation3 + $0x1] sm:$0x1] %vm283, %v282
    // Predicated region
    $region26: #{tpu_custom_call.1} parent=1 // pred_check
      _
    $region27: #{tpu_custom_call.1} parent=1 // pred_check_branch
      %287 = sbr.rel (0) target = $region29
    $region28: #{tpu_custom_call.1} parent=1 // pred_region
      %289 = vsyncadd [#allocation4], 0
      %s290 = sshll.u32 [#allocation3], 4
      %s291 = int_to_ptr.vmem [resolvable:$true] %s290
      %s292 = sshll.u32 %s6, 4
      %s293 = int_to_ptr.hbm [resolvable:$true] %s292
      %298 = dma.vmem_to_hbm [thread:$0]  %s291, 32, %s293, [#allocation4], 16, 16, 1
    $region29: #{tpu_custom_call.1} parent=1 // pred_fallthru
      _
    // Predicated region
    $region30: #{tpu_custom_call.1} parent=1 // pred_check
      _
    $region31: #{tpu_custom_call.1} parent=1 // pred_check_branch
      %300 = sbr.rel (0) target = $region33
    $region32: #{tpu_custom_call.1} parent=1 // pred_region
      %302 = dma.done [#allocation4], 32
    $region33: #{tpu_custom_call.1} parent=1 // pred_fallthru
      _
    %303 = vsyncpa [#allocation4], 1

</llo_original>
